<compile_context>
chip_gen: v7x
topology: tpu7x:2x2x1
jax: 0.10.0
libtpu: 0.0.40
codegen_flags: <defaults>
</compile_context>

<pallas_src>
import jax
import jax.numpy as jnp
from jax.experimental import pallas as pl
from jax.experimental.pallas import tpu as pltpu


def _round_up(n, m):
    return ((n + m - 1) // m) * m


def moe_kernel(x_ref, w_ref, b_ref, o_ref):
    # MXU matmul with f32 accumulation, bias add, numerically-stable softmax
    # over the true expert axis.  Exact divide in the epilogue so rows sum to
    # 1 to f32 rounding.
    logits = jnp.dot(x_ref[...], w_ref[...],
                     preferred_element_type=jnp.float32) + b_ref[...]
    m = jnp.max(logits, axis=-1, keepdims=True)
    e = jnp.exp(logits - m)
    denom = jnp.sum(e, axis=-1, keepdims=True)
    o_ref[...] = (e / denom).astype(o_ref.dtype)


def moe_forward(x, w, b, *, tile_rows=512, operand_dtype=None):
    """softmax(x @ w + b, axis=-1).

    x: [..., hidden]          (any leading dims, like nn.Linear)
    w: [hidden, nexpert]      (transpose of PyTorch's [nexpert, hidden] weight)
    b: [nexpert]
    returns [..., nexpert]
    """
    *lead, hidden = x.shape
    nexpert = w.shape[1]
    out_dtype = x.dtype

    op_dtype = (jnp.dtype(operand_dtype) if operand_dtype is not None
                else jnp.dtype(x.dtype))
    row_align = 16 if op_dtype == jnp.dtype(jnp.bfloat16) else 8

    x2 = x.reshape(-1, hidden)
    n = x2.shape[0]

    # Row tile: as large as requested, clamped/aligned for small N; pad the
    # ragged tail with zero rows so every block is full (sliced off below).
    tn = min(int(tile_rows), _round_up(n, row_align))
    tn = max(row_align, _round_up(tn, row_align))
    n_pad = _round_up(n, tn)
    if n_pad != n:
        x2 = jnp.pad(x2, ((0, n_pad - n), (0, 0)))
    x2 = x2.astype(op_dtype)

    w_k = w.astype(op_dtype)
    b_k = b.astype(jnp.float32).reshape(1, nexpert)   # bias stays f32

    grid = (n_pad // tn,)

    # VMEM budget: double-buffered x tile + resident W/bias + double-buffered
    # output tile, with 2x headroom, clamped to [32 MiB, 64 MiB].
    isz = jnp.dtype(op_dtype).itemsize
    need = (2 * tn * hidden * isz        # x tile (double buffered)
            + 2 * hidden * nexpert * isz  # weight (constant block index)
            + 2 * nexpert * 4             # bias
            + 2 * tn * nexpert * 4)       # output tile
    vmem_limit = int(min(max(2 * need, 32 * 1024 * 1024), 64 * 1024 * 1024))

    out = pl.pallas_call(
        moe_kernel,
        out_shape=jax.ShapeDtypeStruct((n_pad, nexpert), out_dtype),
        grid_spec=pltpu.PrefetchScalarGridSpec(
            num_scalar_prefetch=0,
            grid=grid,
            in_specs=[
                # Tile the batch axis; hidden is full-extent per block.
                pl.BlockSpec((tn, hidden), lambda i: (i, 0)),
                # Constant block index -> DMA'd once, stays resident in VMEM.
                pl.BlockSpec((hidden, nexpert), lambda i: (0, 0)),
                pl.BlockSpec((1, nexpert), lambda i: (0, 0)),
            ],
            out_specs=pl.BlockSpec((tn, nexpert), lambda i: (i, 0)),
        ),
        compiler_params=pltpu.CompilerParams(
            dimension_semantics=("parallel",),
            vmem_limit_bytes=vmem_limit,
        ),
    )(x2, w_k, b_k)

    if n_pad != n:
        out = out[:n]
    return out.reshape(*lead, nexpert)


def reference_forward(x, w, b):
    logits = x @ w + b
    return jax.nn.softmax(logits, axis=-1)


if __name__ == "__main__":
    key = jax.random.PRNGKey(0)
    hidden = 96
    bound = 1.0 / (hidden ** 0.5)

    # --- config 1: module defaults (hidden=96, nexpert=1), 3-D input -------
    nexpert = 1
    kx, kw, kb, key = jax.random.split(key, 4)
    x = jax.random.normal(kx, (2, 8, hidden), dtype=jnp.float32)
    w = jax.random.uniform(kw, (hidden, nexpert), jnp.float32, -bound, bound)
    b = jax.random.uniform(kb, (nexpert,), jnp.float32, -bound, bound)

    out = jax.block_until_ready(moe_forward(x, w, b))
    ref = reference_forward(x, w, b)
    assert out.shape == (2, 8, nexpert)
    assert jnp.allclose(out, ref, atol=2e-3, rtol=2e-3), "mismatch (nexpert=1)"

    # --- config 2: multi-expert (hidden=96, nexpert=8), f32 operands -------
    nexpert = 8
    kx, kw, kb, key = jax.random.split(key, 4)
    x = jax.random.normal(kx, (2, 8, hidden), dtype=jnp.float32)
    w = jax.random.uniform(kw, (hidden, nexpert), jnp.float32, -bound, bound)
    b = jax.random.uniform(kb, (nexpert,), jnp.float32, -bound, bound)

    out = jax.block_until_ready(moe_forward(x, w, b))
    ref = reference_forward(x, w, b)
    assert out.shape == (2, 8, nexpert)
    assert jnp.allclose(out, ref, atol=2e-3, rtol=2e-3), "mismatch (f32 path)"
    assert jnp.allclose(jnp.sum(out, axis=-1), 1.0, atol=1e-3), \
        "softmax rows must sum to 1"

    # --- config 3: same weights, bf16 HBM operands (halves x read traffic) -
    out_bf16 = jax.block_until_ready(
        moe_forward(x, w, b, operand_dtype=jnp.bfloat16))
    assert out_bf16.shape == (2, 8, nexpert)
    assert jnp.allclose(out_bf16, ref, atol=3e-2, rtol=3e-2), \
        "mismatch (bf16 operand path)"

    # --- config 4: ragged batch (row-tile tail padding path) ---------------
    kx, key = jax.random.split(key)
    x_odd = jax.random.normal(kx, (3, 7, hidden), dtype=jnp.float32)
    out_odd = jax.block_until_ready(moe_forward(x_odd, w, b))
    ref_odd = reference_forward(x_odd, w, b)
    assert out_odd.shape == (3, 7, nexpert)
    assert jnp.allclose(out_odd, ref_odd, atol=2e-3, rtol=2e-3), \
        "mismatch (ragged batch)"

    print("KERNEL_OK")
</pallas_src>

<mosaic_0001>
module attributes {stable_mosaic.version = 11 : i64} {
  func.func @moe_kernel(%arg0: i32, %arg1: memref<16x96xf32, #tpu.memory_space<vmem>>, %arg2: memref<96x1xf32, #tpu.memory_space<vmem>>, %arg3: memref<1x1xf32, #tpu.memory_space<vmem>>, %arg4: memref<16x1xf32, #tpu.memory_space<vmem>>) attributes {dimension_semantics = [#tpu.dimension_semantics<parallel>], iteration_bounds = array<i64: 1>, scalar_prefetch = 0 : i64, scratch_operands = 0 : i64, tpu.core_type = #tpu.core_type<tc>, window_params = [{transform_indices = @transform_0, window_bounds = array<i64: 16, 96>}, {pipeline_mode = #tpu.pipeline_mode<synchronous>, transform_indices = @transform_1, window_bounds = array<i64: 96, 1>}, {pipeline_mode = #tpu.pipeline_mode<synchronous>, transform_indices = @transform_2, window_bounds = array<i64: 1, 1>}, {transform_indices = @transform_3, window_bounds = array<i64: 16, 1>}]} {
    %c0 = arith.constant 0 : index
    %c0_0 = arith.constant 0 : index
    %0 = vector.load %arg1[%c0, %c0_0] : memref<16x96xf32, #tpu.memory_space<vmem>>, vector<16x96xf32>
    %c0_1 = arith.constant 0 : index
    %c0_2 = arith.constant 0 : index
    %1 = vector.load %arg2[%c0_1, %c0_2] : memref<96x1xf32, #tpu.memory_space<vmem>>, vector<96x1xf32>
    %cst = arith.constant dense<0.000000e+00> : vector<16x1xf32>
    %2 = tpu.matmul %0, %1, %cst {dimension_numbers = #tpu.dot_dimension_numbers<[1], [0], [0], [1], [0, 0, 1, 1], [], []>} : vector<16x96xf32>, vector<96x1xf32>, vector<16x1xf32> -> vector<16x1xf32>
    %c0_3 = arith.constant 0 : index
    %c0_4 = arith.constant 0 : index
    %3 = vector.load %arg3[%c0_3, %c0_4] : memref<1x1xf32, #tpu.memory_space<vmem>>, vector<1x1xf32>
    %4 = vector.broadcast %3 : vector<1x1xf32> to vector<16x1xf32>
    %5 = arith.addf %2, %4 : vector<16x1xf32>
    %cst_5 = arith.constant dense<0xFF800000> : vector<16xf32>
    %6 = vector.multi_reduction <maximumf>, %5, %cst_5 [1] : vector<16x1xf32> to vector<16xf32>
    %7 = vector.shape_cast %6 : vector<16xf32> to vector<16x1xf32>
    %8 = arith.subf %5, %7 : vector<16x1xf32>
    %9 = math.exp %8 : vector<16x1xf32>
    %cst_6 = arith.constant dense<0.000000e+00> : vector<16xf32>
    %10 = vector.multi_reduction <add>, %9, %cst_6 [1] : vector<16x1xf32> to vector<16xf32>
    %11 = vector.shape_cast %10 : vector<16xf32> to vector<16x1xf32>
    %12 = arith.divf %9, %11 : vector<16x1xf32>
    %c0_7 = arith.constant 0 : index
    %c0_8 = arith.constant 0 : index
    %13 = vector.load %arg4[%c0_7, %c0_8] : memref<16x1xf32, #tpu.memory_space<vmem>>, vector<16x1xf32>
    tpu.vector_store %arg4[%c0_7, %c0_8], %12 {strides = array<i32>} : memref<16x1xf32, #tpu.memory_space<vmem>>, vector<16x1xf32>,
    return
  }
  func.func @transform_0(%arg0: i32) -> (i32, i32) {
    %c0_i32 = arith.constant 0 : i32
    %c0_i32_0 = arith.constant 0 : i32
    return %arg0, %c0_i32 : i32, i32
  }
  func.func @transform_1(%arg0: i32) -> (i32, i32) {
    %c0_i32 = arith.constant 0 : i32
    %c0_i32_0 = arith.constant 0 : i32
    %c0_i32_1 = arith.constant 0 : i32
    return %c0_i32, %c0_i32_0 : i32, i32
  }
  func.func @transform_2(%arg0: i32) -> (i32, i32) {
    %c0_i32 = arith.constant 0 : i32
    %c0_i32_0 = arith.constant 0 : i32
    %c0_i32_1 = arith.constant 0 : i32
    return %c0_i32, %c0_i32_0 : i32, i32
  }
  func.func @transform_3(%arg0: i32) -> (i32, i32) {
    %c0_i32 = arith.constant 0 : i32
    %c0_i32_0 = arith.constant 0 : i32
    return %arg0, %c0_i32 : i32, i32
  }
}

</mosaic_0001>

<llo_original>
// kernel: tpu_custom_call.1
$region0: #{tpu_custom_call.1}
  #allocation0 [shape = 'u32[]', space=smem, size = 0x4, offset = 0x4, fixed_abs, tag = 'smem constant byte address 0x4 - core index']
  #allocation1 [shape = 'u32[144,128]{1,0:T(1,128)}', space=vmem, size = 0x12000, scoped, tag = 'internal scratch']
  #allocation2 [shape = 'f32[1,1]{1,0:T(1,128)S(1)}', space=vmem, size = 0x200, scoped, tag = 'scoped memory for tpu_custom_call.1']
  %s0 = inlined_call_operand.vmem [shape: f32[16,96], index: 0, kind: input, shape index: {}]
  %s1 = inlined_call_operand.vmem [shape: f32[96,1], index: 1, kind: input, shape index: {}]
  %s2 = inlined_call_operand.<no memory space> [shape: f32[1,1], index: 2, kind: input, shape index: {}]
  %s3 = inlined_call_operand.vmem [shape: f32[16,1], index: 3, kind: output, shape index: {}]
  %s4 = sld [smem:[#allocation0]]
  $region22: #{tpu_custom_call.1} parent=0
    _
  %s6 = ssub.s32 1, %s4
  %s7 = scalar_select 0, %s6, %s4
  %v8 = vstv %s2
  %9 = vst [vmem:[#allocation2] sm:$0x1] %v8
  // Predicated region
  $region2: #{tpu_custom_call.1} parent=0 // pred_check
    _
  $region3: #{tpu_custom_call.1} parent=0 // pred_check_branch
    %11 = sbr.rel (0) target = $region5
  $region4: #{tpu_custom_call.1} parent=0 // pred_region
    _
  $region5: #{tpu_custom_call.1} parent=0 // pred_fallthru
    _
  // Predicated region
  $region6: #{tpu_custom_call.1} parent=0 // pred_check
    _
  $region7: #{tpu_custom_call.1} parent=0 // pred_check_branch
    %13 = sbr.rel (0) target = $region9
  $region8: #{tpu_custom_call.1} parent=0 // pred_region
    _
  $region9: #{tpu_custom_call.1} parent=0 // pred_fallthru
    _
  // Predicated region
  $region10: #{tpu_custom_call.1} parent=0 // pred_check
    _
  $region11: #{tpu_custom_call.1} parent=0 // pred_check_branch
    %15 = sbr.rel (0) target = $region13
  $region12: #{tpu_custom_call.1} parent=0 // pred_region
    _
  $region13: #{tpu_custom_call.1} parent=0 // pred_fallthru
    _
  %v16 = vld [vmem:[%s0] sm:$0xff]
  %v17 = vld [vmem:[%s0 + $0x8] sm:$0xff]
  %v18 = vld [vmem:[%s1] sm:$0xff]
  %v19 = vld [vmem:[%s1 + $0x8] sm:$0xff]
  %v20 = vld [vmem:[%s1 + $0x10] sm:$0xff]
  %v21 = vld [vmem:[%s1 + $0x18] sm:$0xff]
  %v22 = vld [vmem:[%s1 + $0x20] sm:$0xff]
  %v23 = vld [vmem:[%s1 + $0x28] sm:$0xff]
  %v24 = vld [vmem:[%s1 + $0x30] sm:$0xff]
  %v25 = vld [vmem:[%s1 + $0x38] sm:$0xff]
  %v26 = vld [vmem:[%s1 + $0x40] sm:$0xff]
  %v27 = vld [vmem:[%s1 + $0x48] sm:$0xff]
  %v28 = vld [vmem:[%s1 + $0x50] sm:$0xff]
  %v29 = vld [vmem:[%s1 + $0x58] sm:$0xff]
  %v30 = vld [vmem:[#allocation2] sm:$0x1]
  %v32 = vlaneseq
  %v33 = vshrl.u32 %v32, 7
  %v34 = vsub.s32 0, %v33
  %v35 = vrot.slane %v30, %v34
  %vm37 = vcmask 785408
  %v39 = vsel %vm37, %v16, 0
  %v42 = vsel %vm37, %v17, 0
  %44 = vmatprep.subr.mxu0 0.0
  %45 = vmatpush1.msra.mxu0 %v18
  %46 = vmatprep.subr.mxu0 0.0
  %47 = vmatpush1.msra.mxu0 %v19
  %48 = vmatprep.subr.mxu0 0.0
  %49 = vmatpush1.msra.mxu0 %v20
  %50 = vmatprep.subr.mxu0 0.0
  %51 = vmatpush1.msra.mxu0 %v21
  %52 = vmatprep.subr.mxu0 0.0
  %53 = vmatpush1.msra.mxu0 %v22
  %54 = vmatprep.subr.mxu0 0.0
  %55 = vmatpush1.msra.mxu0 %v23
  %56 = vmatprep.subr.mxu0 0.0
  %57 = vmatpush1.msra.mxu0 %v24
  %58 = vmatprep.subr.mxu0 0.0
  %59 = vmatpush1.msra.mxu0 %v25
  %60 = vmatprep.subr.mxu0 0.0
  %61 = vmatpush1.msra.mxu0 %v26
  %62 = vmatprep.subr.mxu0 0.0
  %63 = vmatpush1.msra.mxu0 %v27
  %64 = vmatprep.subr.mxu0 0.0
  %65 = vmatpush1.msra.mxu0 %v28
  %66 = vmatprep.subr.mxu0 0.0
  %67 = vmatpush1.msra.mxu0 %v29
  %68 = vmatprep.subr.mxu0 0.0
  %69 = vmatpush1.msra.mxu0 0.0
  %70 = vmatprep.subr.mxu0 0.0
  %71 = vmatpush1.msra.mxu0 0.0
  %72 = vmatprep.subr.mxu0 0.0
  %73 = vmatpush1.msra.mxu0 0.0
  %74 = vmatprep.subr.mxu0 0.0
  %75 = vmatpush1.msra.mxu0 0.0
  %76 = vmatprep.subr.mxu0 0.0
  %77 = vmatpush1.msra.mxu0 0.0
  %78 = vmatprep.subr.mxu0 0.0
  %79 = vmatpush1.msra.mxu0 0.0
  %80 = vmatprep.subr.mxu0 0.0
  %81 = vmatpush1.msra.mxu0 0.0
  %82 = vmatprep.subr.mxu0 0.0
  %83 = vmatpush1.msra.mxu0 0.0
  %84 = vmatprep.subr.mxu0 0.0
  %85 = vmatpush1.msra.mxu0 0.0
  %86 = vmatprep.subr.mxu0 0.0
  %87 = vmatpush1.msra.mxu0 0.0
  %88 = vmatprep.subr.mxu0 0.0
  %89 = vmatpush1.msra.mxu0 0.0
  %90 = vmatprep.subr.mxu0 0.0
  %91 = vmatpush1.msra.mxu0 0.0
  %92 = vmatprep.subr.mxu0 0.0
  %93 = vmatpush1.msra.mxu0 0.0
  %94 = vmatprep.subr.mxu0 0.0
  %95 = vmatpush1.msra.mxu0 0.0
  %96 = vmatprep.subr.mxu0 0.0
  %97 = vmatpush1.msra.mxu0 0.0
  %98 = vmatprep.subr.mxu0 0.0
  %99 = vmatpush1.msra.mxu0 0.0
  %100 = vmatprep.subr.mxu0 0.0
  %101 = vmatpush1.msra.mxu0 0.0
  %102 = vmatprep.subr.mxu0 0.0
  %103 = vmatpush1.msra.mxu0 0.0
  %104 = vmatprep.subr.mxu0 0.0
  %105 = vmatpush1.msra.mxu0 0.0
  %106 = vmatprep.subr.mxu0 0.0
  %107 = vmatpush1.msra.mxu0 0.0
  %108 = vmatprep.mubr.f32.mxu0 0.0
  %109 = vmatmul.mubr.f32.gmra.mrb[0].mxu0 %v39
  %v110 = vpop.f32.mrb[0].mxu0
  %v111 = vadd.f32 %v35, %v110
  %v112 = vpop.f32.mrb[0].mxu0
  %113 = vmatprep.mubr.f32.mxu0 0.0
  %114 = vmatmul.mubr.f32.gmra.mrb[0].mxu0 %v42
  %v115 = vpop.f32.mrb[0].mxu0
  %v116 = vadd.f32 %v35, %v115
  %v117 = vpop.f32.mrb[0].mxu0
  %118 = vdwg.mxu0
  %v119 = vsub.f32 %v111, %v111
  %v120 = vsub.f32 %v116, %v116
  %v121 = vmul.f32 %v119, 1.442695
  %v122 = vpow.pop %v121
  %v123 = vmul.f32 %v120, 1.442695
  %v124 = vpow.pop %v123
  %v125 = vadd.f32 %v122, 0.0
  %v126 = vadd.f32 %v124, 0.0
  %v127 = vrcp.pop %v125
  %v128 = vmul.f32 %v122, %v127
  %v129 = vrcp.pop %v126
  %v130 = vmul.f32 %v124, %v129
  %vm131 = vcmask 7168
  %132 = vst.msk [vmem:[%s3] sm:$0xff] %vm131, %v128
  %133 = vst.msk [vmem:[%s3 + $0x8] sm:$0xff] %vm131, %v130
  // Predicated region
  $region14: #{tpu_custom_call.1} parent=0 // pred_check
    _
  $region15: #{tpu_custom_call.1} parent=0 // pred_check_branch
    %135 = sbr.rel (0) target = $region17
  $region16: #{tpu_custom_call.1} parent=0 // pred_region
    _
  $region17: #{tpu_custom_call.1} parent=0 // pred_fallthru
    _
  // Predicated region
  $region18: #{tpu_custom_call.1} parent=0 // pred_check
    _
  $region19: #{tpu_custom_call.1} parent=0 // pred_check_branch
    %137 = sbr.rel (0) target = $region21
  $region20: #{tpu_custom_call.1} parent=0 // pred_region
    _
  $region21: #{tpu_custom_call.1} parent=0 // pred_fallthru
    _

</llo_original>
